<compile_context>
chip_gen: v7x
topology: tpu7x:2x2x1
jax: 0.10.0
libtpu: 0.0.40
codegen_flags: <defaults>
</compile_context>

<pallas_src>
import jax
import jax.numpy as jnp
from jax.experimental import pallas as pl
from jax.experimental.pallas import tpu as pltpu


def _round_up(x, m):
    return (x + m - 1) // m * m


def softq_kernel(s_ref, a_ref,
                 w1s_ref, w1a_ref, b1_ref,
                 w2_ref, b2_ref,
                 w3_ref, b3_ref,
                 w4_ref, b4_ref,
                 o_ref):
    cdt = w2_ref.dtype            # MXU input dtype (float32 or bfloat16)

    # ---- layer 1: fused concat -> split matmul (MXU), f32 accumulate --------
    s = s_ref[...].astype(cdt)
    a = a_ref[...].astype(cdt)
    h = (jnp.dot(s, w1s_ref[...], preferred_element_type=jnp.float32)
         + jnp.dot(a, w1a_ref[...], preferred_element_type=jnp.float32)
         + b1_ref[...])
    h = jnp.maximum(h, 0.0)

    # ---- layer 2 --------------------------------------------------------------
    h = jnp.dot(h.astype(cdt), w2_ref[...],
                preferred_element_type=jnp.float32) + b2_ref[...]
    h = jnp.maximum(h, 0.0)

    # ---- layer 3 --------------------------------------------------------------
    h = jnp.dot(h.astype(cdt), w3_ref[...],
                preferred_element_type=jnp.float32) + b3_ref[...]
    h = jnp.maximum(h, 0.0)

    # ---- layer 4: (H_pad, 128)-padded head -> lane-dense (tm, 128) store -----
    q = jnp.dot(h.astype(cdt), w4_ref[...],
                preferred_element_type=jnp.float32) + b4_ref[...]
    o_ref[...] = q.astype(o_ref.dtype)


def softq_forward(state, action, prepared):
    """Pallas implementation of SoftQNet.forward(state, action) -> (B, 1)."""
    B, n_states = state.shape
    _, n_actions = action.shape

    w1s, w1a = prepared["w1s"], prepared["w1a"]
    w2, w3, w4 = prepared["w2"], prepared["w3"], prepared["w4"]
    b1, b2, b3, b4 = prepared["b1"], prepared["b2"], prepared["b3"], prepared["b4"]
    H_pad = w2.shape[0]
    OUT_PAD = w4.shape[1]

    # Batch tiling: tm rows per grid step (multiple of 8 for f32 sublanes).
    tm = min(512, _round_up(B, 8))
    B_pad = _round_up(B, tm)
    if B_pad != B:
        state = jnp.pad(state, ((0, B_pad - B), (0, 0)))
        action = jnp.pad(action, ((0, B_pad - B), (0, 0)))

    def batch_spec(cols):                       # tiled over the batch grid axis
        return pl.BlockSpec((tm, cols), lambda i: (i, 0))

    def resident(shape):                        # weights/biases stay in VMEM
        return pl.BlockSpec(shape, lambda i: (0, 0))

    out = pl.pallas_call(
        softq_kernel,
        out_shape=jax.ShapeDtypeStruct((B_pad, OUT_PAD), jnp.float32),
        grid=(B_pad // tm,),
        in_specs=[
            batch_spec(n_states),
            batch_spec(n_actions),
            resident((n_states, H_pad)),
            resident((n_actions, H_pad)),
            resident((1, H_pad)),
            resident((H_pad, H_pad)),
            resident((1, H_pad)),
            resident((H_pad, H_pad)),
            resident((1, H_pad)),
            resident((H_pad, OUT_PAD)),
            resident((1, OUT_PAD)),
        ],
        out_specs=batch_spec(OUT_PAD),
        compiler_params=pltpu.CompilerParams(
            dimension_semantics=("parallel",)),
    )(state, action, w1s, w1a, b1, w2, b2, w3, b3, w4, b4)

    # Column 0 of the lane-dense slab is q; padded batch rows / lanes are dropped.
    return out[:B, :1]


def init_softq_params(key, n_states, n_actions, hidden_dim, init_w=0.003):
    """PyTorch-equivalent init. Weights stored transposed: (in_features, out_features).

    nn.Linear default: U(-1/sqrt(fan_in), 1/sqrt(fan_in)) for weight and bias;
    linear4 overridden to U(-init_w, init_w) as in the module's __init__.
    """
    def linear_init(k, fan_in, fan_out, bound):
        kw, kb = jax.random.split(k)
        w = jax.random.uniform(kw, (fan_in, fan_out), jnp.float32, -bound, bound)
        b = jax.random.uniform(kb, (1, fan_out), jnp.float32, -bound, bound)
        return w, b

    n_in = n_states + n_actions
    k1, k2, k3, k4 = jax.random.split(key, 4)
    p1 = linear_init(k1, n_in, hidden_dim, 1.0 / float(n_in) ** 0.5)
    p2 = linear_init(k2, hidden_dim, hidden_dim, 1.0 / float(hidden_dim) ** 0.5)
    p3 = linear_init(k3, hidden_dim, hidden_dim, 1.0 / float(hidden_dim) ** 0.5)
    p4 = linear_init(k4, hidden_dim, 1, init_w)
    return (p1, p2, p3, p4)


def prepare_params(params, n_states, param_dtype=jnp.bfloat16):
    """Pad params to lane-dense TPU shapes and split W1 for the fused concat.

    Zero padding is mathematically inert: padded hidden units get weight 0 and
    bias 0, stay 0 through ReLU and contribute nothing downstream; padded head
    lanes are all zero and are sliced away.  Weights are cast to `param_dtype`
    (bf16 halves weight DMA on v6e/v7x); biases stay f32 so the bias+ReLU
    epilogue runs in f32 on every chip generation.
    """
    (w1, b1), (w2, b2), (w3, b3), (w4, b4) = params
    hidden_dim = w1.shape[1]
    H_pad = _round_up(hidden_dim, 128)
    OUT_PAD = 128
    dh = H_pad - hidden_dim

    return {
        "w1s": jnp.pad(w1[:n_states], ((0, 0), (0, dh))).astype(param_dtype),
        "w1a": jnp.pad(w1[n_states:], ((0, 0), (0, dh))).astype(param_dtype),
        "w2": jnp.pad(w2, ((0, dh), (0, dh))).astype(param_dtype),
        "w3": jnp.pad(w3, ((0, dh), (0, dh))).astype(param_dtype),
        "w4": jnp.pad(w4, ((0, dh), (0, OUT_PAD - 1))).astype(param_dtype),
        "b1": jnp.pad(b1, ((0, 0), (0, dh))).astype(jnp.float32),
        "b2": jnp.pad(b2, ((0, 0), (0, dh))).astype(jnp.float32),
        "b3": jnp.pad(b3, ((0, 0), (0, dh))).astype(jnp.float32),
        "b4": jnp.pad(b4, ((0, 0), (0, OUT_PAD - 1))).astype(jnp.float32),
    }


def softq_reference(state, action, params, compute_dtype=jnp.float32):
    """Pure-JAX reference using the same dtype recipe as the kernel."""
    (w1, b1), (w2, b2), (w3, b3), (w4, b4) = params
    x = jnp.concatenate([state, action], axis=1)

    def layer(h, w, b, relu=True):
        y = jnp.dot(h.astype(compute_dtype), w.astype(compute_dtype),
                    preferred_element_type=jnp.float32) + b
        return jnp.maximum(y, 0.0) if relu else y

    h = layer(x, w1, b1)
    h = layer(h, w2, b2)
    h = layer(h, w3, b3)
    return layer(h, w4, b4, relu=False)


if __name__ == "__main__":
    n_states, n_actions, hidden_dim = 4, 2, 32
    batch = 2

    key = jax.random.PRNGKey(0)
    k_params, k_state, k_action = jax.random.split(key, 3)
    params = init_softq_params(k_params, n_states, n_actions, hidden_dim)
    state = jax.random.normal(k_state, (batch, n_states), jnp.float32)
    action = jax.random.normal(k_action, (batch, n_actions), jnp.float32)

    fwd = jax.jit(softq_forward)

    # float32 weights: parity with the PyTorch float32 module.
    prep_f32 = prepare_params(params, n_states, param_dtype=jnp.float32)
    q_f32 = fwd(state, action, prep_f32)
    jax.block_until_ready(q_f32)
    ref_f32 = softq_reference(state, action, params, jnp.float32)
    assert q_f32.shape == (batch, 1), q_f32.shape
    assert jnp.allclose(q_f32, ref_f32, atol=1e-4, rtol=1e-4), (q_f32, ref_f32)

    # bfloat16 weight storage (v6e/v7x DMA optimization), f32 accumulate/epilogue.
    prep_bf16 = prepare_params(params, n_states, param_dtype=jnp.bfloat16)
    q_bf16 = fwd(state, action, prep_bf16)
    jax.block_until_ready(q_bf16)
    ref_bf16 = softq_reference(state, action, params, jnp.bfloat16)
    assert q_bf16.shape == (batch, 1), q_bf16.shape
    assert jnp.allclose(q_bf16, ref_bf16, atol=2e-3, rtol=2e-2), (q_bf16, ref_bf16)

    print("KERNEL_OK")
</pallas_src>

<mosaic_0001>
module attributes {stable_mosaic.version = 11 : i64} {
  func.func @softq_kernel(%arg0: i32, %arg1: memref<8x4xf32, #tpu.memory_space<vmem>>, %arg2: memref<8x2xf32, #tpu.memory_space<vmem>>, %arg3: memref<4x128xf32, #tpu.memory_space<vmem>>, %arg4: memref<2x128xf32, #tpu.memory_space<vmem>>, %arg5: memref<1x128xf32, #tpu.memory_space<vmem>>, %arg6: memref<128x128xf32, #tpu.memory_space<vmem>>, %arg7: memref<1x128xf32, #tpu.memory_space<vmem>>, %arg8: memref<128x128xf32, #tpu.memory_space<vmem>>, %arg9: memref<1x128xf32, #tpu.memory_space<vmem>>, %arg10: memref<128x128xf32, #tpu.memory_space<vmem>>, %arg11: memref<1x128xf32, #tpu.memory_space<vmem>>, %arg12: memref<8x128xf32, #tpu.memory_space<vmem>>) attributes {dimension_semantics = [#tpu.dimension_semantics<parallel>], iteration_bounds = array<i64: 1>, scalar_prefetch = 0 : i64, scratch_operands = 0 : i64, tpu.core_type = #tpu.core_type<tc>, window_params = [{transform_indices = @transform_0, window_bounds = array<i64: 8, 4>}, {transform_indices = @transform_1, window_bounds = array<i64: 8, 2>}, {pipeline_mode = #tpu.pipeline_mode<synchronous>, transform_indices = @transform_2, window_bounds = array<i64: 4, 128>}, {pipeline_mode = #tpu.pipeline_mode<synchronous>, transform_indices = @transform_3, window_bounds = array<i64: 2, 128>}, {pipeline_mode = #tpu.pipeline_mode<synchronous>, transform_indices = @transform_4, window_bounds = array<i64: 1, 128>}, {pipeline_mode = #tpu.pipeline_mode<synchronous>, transform_indices = @transform_5, window_bounds = array<i64: 128, 128>}, {pipeline_mode = #tpu.pipeline_mode<synchronous>, transform_indices = @transform_6, window_bounds = array<i64: 1, 128>}, {pipeline_mode = #tpu.pipeline_mode<synchronous>, transform_indices = @transform_7, window_bounds = array<i64: 128, 128>}, {pipeline_mode = #tpu.pipeline_mode<synchronous>, transform_indices = @transform_8, window_bounds = array<i64: 1, 128>}, {pipeline_mode = #tpu.pipeline_mode<synchronous>, transform_indices = @transform_9, window_bounds = array<i64: 128, 128>}, {pipeline_mode = #tpu.pipeline_mode<synchronous>, transform_indices = @transform_10, window_bounds = array<i64: 1, 128>}, {transform_indices = @transform_11, window_bounds = array<i64: 8, 128>}]} {
    %c0 = arith.constant 0 : index
    %c0_0 = arith.constant 0 : index
    %0 = vector.load %arg1[%c0, %c0_0] : memref<8x4xf32, #tpu.memory_space<vmem>>, vector<8x4xf32>
    %c0_1 = arith.constant 0 : index
    %c0_2 = arith.constant 0 : index
    %1 = vector.load %arg2[%c0_1, %c0_2] : memref<8x2xf32, #tpu.memory_space<vmem>>, vector<8x2xf32>
    %c0_3 = arith.constant 0 : index
    %c0_4 = arith.constant 0 : index
    %2 = vector.load %arg3[%c0_3, %c0_4] : memref<4x128xf32, #tpu.memory_space<vmem>>, vector<4x128xf32>
    %cst = arith.constant dense<0.000000e+00> : vector<8x128xf32>
    %3 = tpu.matmul %0, %2, %cst {dimension_numbers = #tpu.dot_dimension_numbers<[1], [0], [0], [1], [0, 0, 1, 1], [], []>} : vector<8x4xf32>, vector<4x128xf32>, vector<8x128xf32> -> vector<8x128xf32>
    %c0_5 = arith.constant 0 : index
    %c0_6 = arith.constant 0 : index
    %4 = vector.load %arg4[%c0_5, %c0_6] : memref<2x128xf32, #tpu.memory_space<vmem>>, vector<2x128xf32>
    %cst_7 = arith.constant dense<0.000000e+00> : vector<8x128xf32>
    %5 = tpu.matmul %1, %4, %cst_7 {dimension_numbers = #tpu.dot_dimension_numbers<[1], [0], [0], [1], [0, 0, 1, 1], [], []>} : vector<8x2xf32>, vector<2x128xf32>, vector<8x128xf32> -> vector<8x128xf32>
    %6 = arith.addf %3, %5 : vector<8x128xf32>
    %c0_8 = arith.constant 0 : index
    %c0_9 = arith.constant 0 : index
    %7 = vector.load %arg5[%c0_8, %c0_9] : memref<1x128xf32, #tpu.memory_space<vmem>>, vector<1x128xf32>
    %8 = vector.broadcast %7 : vector<1x128xf32> to vector<8x128xf32>
    %9 = arith.addf %6, %8 : vector<8x128xf32>
    %cst_10 = arith.constant 0.000000e+00 : f32
    %10 = vector.broadcast %cst_10 : f32 to vector<8x128xf32>
    %11 = arith.maximumf %9, %10 : vector<8x128xf32>
    %c0_11 = arith.constant 0 : index
    %c0_12 = arith.constant 0 : index
    %12 = vector.load %arg6[%c0_11, %c0_12] : memref<128x128xf32, #tpu.memory_space<vmem>>, vector<128x128xf32>
    %cst_13 = arith.constant dense<0.000000e+00> : vector<8x128xf32>
    %13 = tpu.matmul %11, %12, %cst_13 {dimension_numbers = #tpu.dot_dimension_numbers<[1], [0], [0], [1], [0, 0, 1, 1], [], []>} : vector<8x128xf32>, vector<128x128xf32>, vector<8x128xf32> -> vector<8x128xf32>
    %c0_14 = arith.constant 0 : index
    %c0_15 = arith.constant 0 : index
    %14 = vector.load %arg7[%c0_14, %c0_15] : memref<1x128xf32, #tpu.memory_space<vmem>>, vector<1x128xf32>
    %15 = vector.broadcast %14 : vector<1x128xf32> to vector<8x128xf32>
    %16 = arith.addf %13, %15 : vector<8x128xf32>
    %cst_16 = arith.constant 0.000000e+00 : f32
    %17 = vector.broadcast %cst_16 : f32 to vector<8x128xf32>
    %18 = arith.maximumf %16, %17 : vector<8x128xf32>
    %c0_17 = arith.constant 0 : index
    %c0_18 = arith.constant 0 : index
    %19 = vector.load %arg8[%c0_17, %c0_18] : memref<128x128xf32, #tpu.memory_space<vmem>>, vector<128x128xf32>
    %cst_19 = arith.constant dense<0.000000e+00> : vector<8x128xf32>
    %20 = tpu.matmul %18, %19, %cst_19 {dimension_numbers = #tpu.dot_dimension_numbers<[1], [0], [0], [1], [0, 0, 1, 1], [], []>} : vector<8x128xf32>, vector<128x128xf32>, vector<8x128xf32> -> vector<8x128xf32>
    %c0_20 = arith.constant 0 : index
    %c0_21 = arith.constant 0 : index
    %21 = vector.load %arg9[%c0_20, %c0_21] : memref<1x128xf32, #tpu.memory_space<vmem>>, vector<1x128xf32>
    %22 = vector.broadcast %21 : vector<1x128xf32> to vector<8x128xf32>
    %23 = arith.addf %20, %22 : vector<8x128xf32>
    %cst_22 = arith.constant 0.000000e+00 : f32
    %24 = vector.broadcast %cst_22 : f32 to vector<8x128xf32>
    %25 = arith.maximumf %23, %24 : vector<8x128xf32>
    %c0_23 = arith.constant 0 : index
    %c0_24 = arith.constant 0 : index
    %26 = vector.load %arg10[%c0_23, %c0_24] : memref<128x128xf32, #tpu.memory_space<vmem>>, vector<128x128xf32>
    %cst_25 = arith.constant dense<0.000000e+00> : vector<8x128xf32>
    %27 = tpu.matmul %25, %26, %cst_25 {dimension_numbers = #tpu.dot_dimension_numbers<[1], [0], [0], [1], [0, 0, 1, 1], [], []>} : vector<8x128xf32>, vector<128x128xf32>, vector<8x128xf32> -> vector<8x128xf32>
    %c0_26 = arith.constant 0 : index
    %c0_27 = arith.constant 0 : index
    %28 = vector.load %arg11[%c0_26, %c0_27] : memref<1x128xf32, #tpu.memory_space<vmem>>, vector<1x128xf32>
    %29 = vector.broadcast %28 : vector<1x128xf32> to vector<8x128xf32>
    %30 = arith.addf %27, %29 : vector<8x128xf32>
    %c0_28 = arith.constant 0 : index
    %c0_29 = arith.constant 0 : index
    %31 = vector.load %arg12[%c0_28, %c0_29] : memref<8x128xf32, #tpu.memory_space<vmem>>, vector<8x128xf32>
    tpu.vector_store %arg12[%c0_28, %c0_29], %30 {strides = array<i32>} : memref<8x128xf32, #tpu.memory_space<vmem>>, vector<8x128xf32>,
    return
  }
  func.func @transform_0(%arg0: i32) -> (i32, i32) {
    %c0_i32 = arith.constant 0 : i32
    %c0_i32_0 = arith.constant 0 : i32
    return %arg0, %c0_i32 : i32, i32
  }
  func.func @transform_1(%arg0: i32) -> (i32, i32) {
    %c0_i32 = arith.constant 0 : i32
    %c0_i32_0 = arith.constant 0 : i32
    return %arg0, %c0_i32 : i32, i32
  }
  func.func @transform_2(%arg0: i32) -> (i32, i32) {
    %c0_i32 = arith.constant 0 : i32
    %c0_i32_0 = arith.constant 0 : i32
    %c0_i32_1 = arith.constant 0 : i32
    return %c0_i32, %c0_i32_0 : i32, i32
  }
  func.func @transform_3(%arg0: i32) -> (i32, i32) {
    %c0_i32 = arith.constant 0 : i32
    %c0_i32_0 = arith.constant 0 : i32
    %c0_i32_1 = arith.constant 0 : i32
    return %c0_i32, %c0_i32_0 : i32, i32
  }
  func.func @transform_4(%arg0: i32) -> (i32, i32) {
    %c0_i32 = arith.constant 0 : i32
    %c0_i32_0 = arith.constant 0 : i32
    %c0_i32_1 = arith.constant 0 : i32
    return %c0_i32, %c0_i32_0 : i32, i32
  }
  func.func @transform_5(%arg0: i32) -> (i32, i32) {
    %c0_i32 = arith.constant 0 : i32
    %c0_i32_0 = arith.constant 0 : i32
    %c0_i32_1 = arith.constant 0 : i32
    return %c0_i32, %c0_i32_0 : i32, i32
  }
  func.func @transform_6(%arg0: i32) -> (i32, i32) {
    %c0_i32 = arith.constant 0 : i32
    %c0_i32_0 = arith.constant 0 : i32
    %c0_i32_1 = arith.constant 0 : i32
    return %c0_i32, %c0_i32_0 : i32, i32
  }
  func.func @transform_7(%arg0: i32) -> (i32, i32) {
    %c0_i32 = arith.constant 0 : i32
    %c0_i32_0 = arith.constant 0 : i32
    %c0_i32_1 = arith.constant 0 : i32
    return %c0_i32, %c0_i32_0 : i32, i32
  }
  func.func @transform_8(%arg0: i32) -> (i32, i32) {
    %c0_i32 = arith.constant 0 : i32
    %c0_i32_0 = arith.constant 0 : i32
    %c0_i32_1 = arith.constant 0 : i32
    return %c0_i32, %c0_i32_0 : i32, i32
  }
  func.func @transform_9(%arg0: i32) -> (i32, i32) {
    %c0_i32 = arith.constant 0 : i32
    %c0_i32_0 = arith.constant 0 : i32
    %c0_i32_1 = arith.constant 0 : i32
    return %c0_i32, %c0_i32_0 : i32, i32
  }
  func.func @transform_10(%arg0: i32) -> (i32, i32) {
    %c0_i32 = arith.constant 0 : i32
    %c0_i32_0 = arith.constant 0 : i32
    %c0_i32_1 = arith.constant 0 : i32
    return %c0_i32, %c0_i32_0 : i32, i32
  }
  func.func @transform_11(%arg0: i32) -> (i32, i32) {
    %c0_i32 = arith.constant 0 : i32
    %c0_i32_0 = arith.constant 0 : i32
    return %arg0, %c0_i32 : i32, i32
  }
}

</mosaic_0001>

<llo_original>
// kernel: softq_forward.1
$region0: #{softq_forward.1}
  #allocation0 [shape = 'u32[]', space=smem, size = 0x4, offset = 0x4, fixed_abs, tag = 'smem constant byte address 0x4 - core index']
  #allocation1 [shape = 'u32[144,128]{1,0:T(1,128)}', space=vmem, size = 0x12000, scoped, tag = 'internal scratch']
  %s0 = inlined_call_operand.vmem [shape: f32[8,4], index: 0, kind: input, shape index: {}]
  %s1 = inlined_call_operand.vmem [shape: f32[8,2], index: 1, kind: input, shape index: {}]
  %s2 = inlined_call_operand.vmem [shape: f32[4,128], index: 2, kind: input, shape index: {}]
  %s3 = inlined_call_operand.vmem [shape: f32[2,128], index: 3, kind: input, shape index: {}]
  %s4 = inlined_call_operand.vmem [shape: f32[1,128], index: 4, kind: input, shape index: {}]
  %s5 = inlined_call_operand.hbm [shape: f32[128,128], index: 5, kind: input, shape index: {}]
  %s6 = inlined_call_operand.vmem [shape: f32[1,128], index: 6, kind: input, shape index: {}]
  %s7 = inlined_call_operand.hbm [shape: f32[128,128], index: 7, kind: input, shape index: {}]
  %s8 = inlined_call_operand.vmem [shape: f32[1,128], index: 8, kind: input, shape index: {}]
  %s9 = inlined_call_operand.hbm [shape: f32[128,128], index: 9, kind: input, shape index: {}]
  %s10 = inlined_call_operand.vmem [shape: f32[1,128], index: 10, kind: input, shape index: {}]
  %s11 = inlined_call_operand.vmem [shape: f32[8,128], index: 11, kind: output, shape index: {}]
  %s12 = sld [smem:[#allocation0]]
  $region66: #{softq_forward.1} parent=0
    _
  %s14 = ssub.s32 1, %s12
  %s15 = scalar_select 0, %s14, %s12
  $region1: #{softq_forward.1} parent=0
    #allocation2 [shape = 'u8[65536]{0}', space=vmem, size = 0x10000, scoped, tag = 'input window, operand 5, single buffered']
    #allocation3 [shape = 's32[1]{0}', space=sflag, size = 0x4, scoped, tag = 'scoped memory for softq_forward.1']
    #allocation4 [shape = 'u8[65536]{0}', space=vmem, size = 0x10000, scoped, tag = 'input window, operand 7, single buffered']
    #allocation5 [shape = 's32[1]{0}', space=sflag, size = 0x4, scoped, tag = 'scoped memory for softq_forward.1']
    #allocation6 [shape = 'u8[65536]{0}', space=vmem, size = 0x10000, scoped, tag = 'input window, operand 9, single buffered']
    %16 = vsyncpa [#allocation3], 0
    %17 = vsyncpa [#allocation5], 0
    // Predicated region
    $region2: #{softq_forward.1} parent=1 // pred_check
      _
    $region3: #{softq_forward.1} parent=1 // pred_check_branch
      %19 = sbr.rel (0) target = $region5
    $region4: #{softq_forward.1} parent=1 // pred_region
      _
    $region5: #{softq_forward.1} parent=1 // pred_fallthru
      _
    // Predicated region
    $region6: #{softq_forward.1} parent=1 // pred_check
      _
    $region7: #{softq_forward.1} parent=1 // pred_check_branch
      %21 = sbr.rel (0) target = $region9
    $region8: #{softq_forward.1} parent=1 // pred_region
      _
    $region9: #{softq_forward.1} parent=1 // pred_fallthru
      _
    // Predicated region
    $region10: #{softq_forward.1} parent=1 // pred_check
      _
    $region11: #{softq_forward.1} parent=1 // pred_check_branch
      %23 = sbr.rel (0) target = $region13
    $region12: #{softq_forward.1} parent=1 // pred_region
      _
    $region13: #{softq_forward.1} parent=1 // pred_fallthru
      _
    // Predicated region
    $region14: #{softq_forward.1} parent=1 // pred_check
      _
    $region15: #{softq_forward.1} parent=1 // pred_check_branch
      %25 = sbr.rel (0) target = $region17
    $region16: #{softq_forward.1} parent=1 // pred_region
      _
    $region17: #{softq_forward.1} parent=1 // pred_fallthru
      _
    // Predicated region
    $region18: #{softq_forward.1} parent=1 // pred_check
      _
    $region19: #{softq_forward.1} parent=1 // pred_check_branch
      %27 = sbr.rel (0) target = $region21
    $region20: #{softq_forward.1} parent=1 // pred_region
      _
    $region21: #{softq_forward.1} parent=1 // pred_fallthru
      _
    // Predicated region
    $region22: #{softq_forward.1} parent=1 // pred_check
      _
    $region23: #{softq_forward.1} parent=1 // pred_check_branch
      %29 = sbr.rel (0) target = $region25
    $region24: #{softq_forward.1} parent=1 // pred_region
      %s31 = ssub.s32 2048, 2048
      %32 = vsyncadd [#allocation3], %s31
      %s33 = sshll.u32 [#allocation2], 4
      %s34 = int_to_ptr.vmem [resolvable:$true] %s33
      %39 = dma.hbm_to_vmem [thread:$0]  %s5, 2048, %s34, [#allocation3], 128, 128, 8
    $region25: #{softq_forward.1} parent=1 // pred_fallthru
      _
    // Predicated region
    $region26: #{softq_forward.1} parent=1 // pred_check
      _
    $region27: #{softq_forward.1} parent=1 // pred_check_branch
      %41 = sbr.rel (0) target = $region29
    $region28: #{softq_forward.1} parent=1 // pred_region
      _
    $region29: #{softq_forward.1} parent=1 // pred_fallthru
      _
    // Predicated region
    $region30: #{softq_forward.1} parent=1 // pred_check
      _
    $region31: #{softq_forward.1} parent=1 // pred_check_branch
      %43 = sbr.rel (0) target = $region33
    $region32: #{softq_forward.1} parent=1 // pred_region
      %s45 = ssub.s32 2048, 2048
      %46 = vsyncadd [#allocation5], %s45
      %s47 = sshll.u32 [#allocation4], 4
      %s48 = int_to_ptr.vmem [resolvable:$true] %s47
      %53 = dma.hbm_to_vmem [thread:$0]  %s7, 2048, %s48, [#allocation5], 128, 128, 8
    $region33: #{softq_forward.1} parent=1 // pred_fallthru
      _
    // Predicated region
    $region34: #{softq_forward.1} parent=1 // pred_check
      _
    $region35: #{softq_forward.1} parent=1 // pred_check_branch
      %55 = sbr.rel (0) target = $region37
    $region36: #{softq_forward.1} parent=1 // pred_region
      _
    $region37: #{softq_forward.1} parent=1 // pred_fallthru
      _
    // Predicated region
    $region38: #{softq_forward.1} parent=1 // pred_check
      _
    $region39: #{softq_forward.1} parent=1 // pred_check_branch
      %57 = sbr.rel (0) target = $region41
    $region40: #{softq_forward.1} parent=1 // pred_region
      %s59 = ssub.s32 2048, 2048
      %60 = vsyncadd [#allocation5], %s59
      %s61 = sshll.u32 [#allocation6], 4
      %s62 = int_to_ptr.vmem [resolvable:$true] %s61
      %67 = dma.hbm_to_vmem [thread:$0]  %s9, 2048, %s62, [#allocation5], 128, 128, 8
    $region41: #{softq_forward.1} parent=1 // pred_fallthru
      _
    // Predicated region
    $region42: #{softq_forward.1} parent=1 // pred_check
      _
    $region43: #{softq_forward.1} parent=1 // pred_check_branch
      %69 = sbr.rel (0) target = $region45
    $region44: #{softq_forward.1} parent=1 // pred_region
      _
    $region45: #{softq_forward.1} parent=1 // pred_fallthru
      _
    // Predicated region
    $region46: #{softq_forward.1} parent=1 // pred_check
      _
    $region47: #{softq_forward.1} parent=1 // pred_check_branch
      %71 = sbr.rel (0) target = $region49
    $region48: #{softq_forward.1} parent=1 // pred_region
      %72 = dma.done [#allocation3], 2048
    $region49: #{softq_forward.1} parent=1 // pred_fallthru
      _
    // Predicated region
    $region50: #{softq_forward.1} parent=1 // pred_check
      _
    $region51: #{softq_forward.1} parent=1 // pred_check_branch
      %74 = sbr.rel (0) target = $region53
    $region52: #{softq_forward.1} parent=1 // pred_region
      %75 = dma.done [#allocation5], 2048
    $region53: #{softq_forward.1} parent=1 // pred_fallthru
      _
    // Predicated region
    $region54: #{softq_forward.1} parent=1 // pred_check
      _
    $region55: #{softq_forward.1} parent=1 // pred_check_branch
      %77 = sbr.rel (0) target = $region57
    $region56: #{softq_forward.1} parent=1 // pred_region
      %78 = dma.done [#allocation5], 2048
    $region57: #{softq_forward.1} parent=1 // pred_fallthru
      _
    %v79 = vld [vmem:[%s0] sm:$0xff]
    %v80 = vld [vmem:[%s1] sm:$0xff]
    %v81 = vld [vmem:[%s2] sm:$0xf]
    %v82 = vld [vmem:[%s3] sm:$0x3]
    %vm83 = vcmask 15360
    %v85 = vsel %vm83, %v80, 0
    %vm87 = vcmask 1041408
    %v89 = vsel %vm87, %v82, 0
    %91 = vmatprep.subr.mxu0 0.0
    %92 = vmatpush1.msra.mxu0 %v89
    %93 = vmatprep.subr.mxu0 0.0
    %94 = vmatpush1.msra.mxu0 0.0
    %95 = vmatprep.subr.mxu0 0.0
    %96 = vmatpush1.msra.mxu0 0.0
    %97 = vmatprep.subr.mxu0 0.0
    %98 = vmatpush1.msra.mxu0 0.0
    %99 = vmatprep.subr.mxu0 0.0
    %100 = vmatpush1.msra.mxu0 0.0
    %101 = vmatprep.subr.mxu0 0.0
    %102 = vmatpush1.msra.mxu0 0.0
    %103 = vmatprep.subr.mxu0 0.0
    %104 = vmatpush1.msra.mxu0 0.0
    %105 = vmatprep.subr.mxu0 0.0
    %106 = vmatpush1.msra.mxu0 0.0
    %107 = vmatprep.subr.mxu0 0.0
    %108 = vmatpush1.msra.mxu0 0.0
    %109 = vmatprep.subr.mxu0 0.0
    %110 = vmatpush1.msra.mxu0 0.0
    %111 = vmatprep.subr.mxu0 0.0
    %112 = vmatpush1.msra.mxu0 0.0
    %113 = vmatprep.subr.mxu0 0.0
    %114 = vmatpush1.msra.mxu0 0.0
    %115 = vmatprep.subr.mxu0 0.0
    %116 = vmatpush1.msra.mxu0 0.0
    %117 = vmatprep.subr.mxu0 0.0
    %118 = vmatpush1.msra.mxu0 0.0
    %119 = vmatprep.subr.mxu0 0.0
    %120 = vmatpush1.msra.mxu0 0.0
    %121 = vmatprep.subr.mxu0 0.0
    %122 = vmatpush1.msra.mxu0 0.0
    %123 = vmatprep.subr.mxu0 0.0
    %124 = vmatpush1.msra.mxu0 0.0
    %125 = vmatprep.subr.mxu0 0.0
    %126 = vmatpush1.msra.mxu0 0.0
    %127 = vmatprep.subr.mxu0 0.0
    %128 = vmatpush1.msra.mxu0 0.0
    %129 = vmatprep.subr.mxu0 0.0
    %130 = vmatpush1.msra.mxu0 0.0
    %131 = vmatprep.subr.mxu0 0.0
    %132 = vmatpush1.msra.mxu0 0.0
    %133 = vmatprep.subr.mxu0 0.0
    %134 = vmatpush1.msra.mxu0 0.0
    %135 = vmatprep.subr.mxu0 0.0
    %136 = vmatpush1.msra.mxu0 0.0
    %137 = vmatprep.subr.mxu0 0.0
    %138 = vmatpush1.msra.mxu0 0.0
    %139 = vmatprep.subr.mxu0 0.0
    %140 = vmatpush1.msra.mxu0 0.0
    %141 = vmatprep.subr.mxu0 0.0
    %142 = vmatpush1.msra.mxu0 0.0
    %143 = vmatprep.subr.mxu0 0.0
    %144 = vmatpush1.msra.mxu0 0.0
    %145 = vmatprep.subr.mxu0 0.0
    %146 = vmatpush1.msra.mxu0 0.0
    %147 = vmatprep.subr.mxu0 0.0
    %148 = vmatpush1.msra.mxu0 0.0
    %149 = vmatprep.subr.mxu0 0.0
    %150 = vmatpush1.msra.mxu0 0.0
    %151 = vmatprep.subr.mxu0 0.0
    %152 = vmatpush1.msra.mxu0 0.0
    %153 = vmatprep.subr.mxu0 0.0
    %154 = vmatpush1.msra.mxu0 0.0
    %155 = vmatprep.mubr.f32.mxu0 0.0
    %156 = vmatmul.mubr.f32.gmra.mrb[0].mxu0 %v85
    %v157 = vpop.f32.mrb[0].mxu0
    %v158 = vadd.f32 0.0, %v157
    %v159 = vpop.f32.mrb[0].mxu0
    %160 = vdwg.mxu0
    %vm161 = vcmask 31744
    %v163 = vsel %vm161, %v79, 0
    %vm165 = vcmask 1043456
    %v167 = vsel %vm165, %v81, 0
    %169 = vmatprep.subr.mxu0 0.0
    %170 = vmatpush1.msra.mxu0 %v167
    %171 = vmatprep.subr.mxu0 0.0
    %172 = vmatpush1.msra.mxu0 0.0
    %173 = vmatprep.subr.mxu0 0.0
    %174 = vmatpush1.msra.mxu0 0.0
    %175 = vmatprep.subr.mxu0 0.0
    %176 = vmatpush1.msra.mxu0 0.0
    %177 = vmatprep.subr.mxu0 0.0
    %178 = vmatpush1.msra.mxu0 0.0
    %179 = vmatprep.subr.mxu0 0.0
    %180 = vmatpush1.msra.mxu0 0.0
    %181 = vmatprep.subr.mxu0 0.0
    %182 = vmatpush1.msra.mxu0 0.0
    %183 = vmatprep.subr.mxu0 0.0
    %184 = vmatpush1.msra.mxu0 0.0
    %185 = vmatprep.subr.mxu0 0.0
    %186 = vmatpush1.msra.mxu0 0.0
    %187 = vmatprep.subr.mxu0 0.0
    %188 = vmatpush1.msra.mxu0 0.0
    %189 = vmatprep.subr.mxu0 0.0
    %190 = vmatpush1.msra.mxu0 0.0
    %191 = vmatprep.subr.mxu0 0.0
    %192 = vmatpush1.msra.mxu0 0.0
    %193 = vmatprep.subr.mxu0 0.0
    %194 = vmatpush1.msra.mxu0 0.0
    %195 = vmatprep.subr.mxu0 0.0
    %196 = vmatpush1.msra.mxu0 0.0
    %197 = vmatprep.subr.mxu0 0.0
    %198 = vmatpush1.msra.mxu0 0.0
    %199 = vmatprep.subr.mxu0 0.0
    %200 = vmatpush1.msra.mxu0 0.0
    %201 = vmatprep.subr.mxu0 0.0
    %202 = vmatpush1.msra.mxu0 0.0
    %203 = vmatprep.subr.mxu0 0.0
    %204 = vmatpush1.msra.mxu0 0.0
    %205 = vmatprep.subr.mxu0 0.0
    %206 = vmatpush1.msra.mxu0 0.0
    %207 = vmatprep.subr.mxu0 0.0
    %208 = vmatpush1.msra.mxu0 0.0
    %209 = vmatprep.subr.mxu0 0.0
    %210 = vmatpush1.msra.mxu0 0.0
    %211 = vmatprep.subr.mxu0 0.0
    %212 = vmatpush1.msra.mxu0 0.0
    %213 = vmatprep.subr.mxu0 0.0
    %214 = vmatpush1.msra.mxu0 0.0
    %215 = vmatprep.subr.mxu0 0.0
    %216 = vmatpush1.msra.mxu0 0.0
    %217 = vmatprep.subr.mxu0 0.0
    %218 = vmatpush1.msra.mxu0 0.0
    %219 = vmatprep.subr.mxu0 0.0
    %220 = vmatpush1.msra.mxu0 0.0
    %221 = vmatprep.subr.mxu0 0.0
    %222 = vmatpush1.msra.mxu0 0.0
    %223 = vmatprep.subr.mxu0 0.0
    %224 = vmatpush1.msra.mxu0 0.0
    %225 = vmatprep.subr.mxu0 0.0
    %226 = vmatpush1.msra.mxu0 0.0
    %227 = vmatprep.subr.mxu0 0.0
    %228 = vmatpush1.msra.mxu0 0.0
    %229 = vmatprep.subr.mxu0 0.0
    %230 = vmatpush1.msra.mxu0 0.0
    %231 = vmatprep.subr.mxu0 0.0
    %232 = vmatpush1.msra.mxu0 0.0
    %233 = vmatprep.mubr.f32.mxu0 0.0
    %234 = vmatmul.mubr.f32.gmra.mrb[0].mxu0 %v163
    %v235 = vpop.f32.mrb[0].mxu0
    %v236 = vadd.f32 %v158, %v235
    %v237 = vpop.f32.mrb[0].mxu0
    %238 = vdwg.mxu0
    %v239 = vld [vmem:[%s4] sm:$0x1]
    %v241 = vlaneseq
    %v242 = vshrl.u32 %v241, 7
    %v243 = vsub.s32 0, %v242
    %v244 = vrot.slane %v239, %v243
    %v246 = vadd.f32 %v236, %v244
    %v247 = vmax.f32 %v246, 0.0
    %v248 = vld [vmem:[#allocation2] sm:$0xff]
    %v249 = vld [vmem:[#allocation2 + $0x8] sm:$0xff]
    %v250 = vld [vmem:[#allocation2 + $0x10] sm:$0xff]
    %v251 = vld [vmem:[#allocation2 + $0x18] sm:$0xff]
    %v252 = vld [vmem:[#allocation2 + $0x20] sm:$0xff]
    %v253 = vld [vmem:[#allocation2 + $0x28] sm:$0xff]
    %v254 = vld [vmem:[#allocation2 + $0x30] sm:$0xff]
    %v255 = vld [vmem:[#allocation2 + $0x38] sm:$0xff]
    %v256 = vld [vmem:[#allocation2 + $0x40] sm:$0xff]
    %v257 = vld [vmem:[#allocation2 + $0x48] sm:$0xff]
    %v258 = vld [vmem:[#allocation2 + $0x50] sm:$0xff]
    %v259 = vld [vmem:[#allocation2 + $0x58] sm:$0xff]
    %v260 = vld [vmem:[#allocation2 + $0x60] sm:$0xff]
    %v261 = vld [vmem:[#allocation2 + $0x68] sm:$0xff]
    %v262 = vld [vmem:[#allocation2 + $0x70] sm:$0xff]
    %v263 = vld [vmem:[#allocation2 + $0x78] sm:$0xff]
    %v264 = vld [vmem:[%s6] sm:$0x1]
    %v266 = vlaneseq
    %v267 = vshrl.u32 %v266, 7
    %v268 = vsub.s32 0, %v267
    %v269 = vrot.slane %v264, %v268
    %271 = vmatprep.subr.mxu0 0.0
    %272 = vmatpush1.msra.mxu0 %v248
    %273 = vmatprep.subr.mxu0 0.0
    %274 = vmatpush1.msra.mxu0 %v249
    %275 = vmatprep.subr.mxu0 0.0
    %276 = vmatpush1.msra.mxu0 %v250
    %277 = vmatprep.subr.mxu0 0.0
    %278 = vmatpush1.msra.mxu0 %v251
    %279 = vmatprep.subr.mxu0 0.0
    %280 = vmatpush1.msra.mxu0 %v252
    %281 = vmatprep.subr.mxu0 0.0
    %282 = vmatpush1.msra.mxu0 %v253
    %283 = vmatprep.subr.mxu0 0.0
    %284 = vmatpush1.msra.mxu0 %v254
    %285 = vmatprep.subr.mxu0 0.0
    %286 = vmatpush1.msra.mxu0 %v255
    %287 = vmatprep.subr.mxu0 0.0
    %288 = vmatpush1.msra.mxu0 %v256
    %289 = vmatprep.subr.mxu0 0.0
    %290 = vmatpush1.msra.mxu0 %v257
    %291 = vmatprep.subr.mxu0 0.0
    %292 = vmatpush1.msra.mxu0 %v258
    %293 = vmatprep.subr.mxu0 0.0
    %294 = vmatpush1.msra.mxu0 %v259
    %295 = vmatprep.subr.mxu0 0.0
    %296 = vmatpush1.msra.mxu0 %v260
    %297 = vmatprep.subr.mxu0 0.0
    %298 = vmatpush1.msra.mxu0 %v261
    %299 = vmatprep.subr.mxu0 0.0
    %300 = vmatpush1.msra.mxu0 %v262
    %301 = vmatprep.subr.mxu0 0.0
    %302 = vmatpush1.msra.mxu0 %v263
    %303 = vmatprep.subr.mxu0 0.0
    %304 = vmatpush1.msra.mxu0 0.0
    %305 = vmatprep.subr.mxu0 0.0
    %306 = vmatpush1.msra.mxu0 0.0
    %307 = vmatprep.subr.mxu0 0.0
    %308 = vmatpush1.msra.mxu0 0.0
    %309 = vmatprep.subr.mxu0 0.0
    %310 = vmatpush1.msra.mxu0 0.0
    %311 = vmatprep.subr.mxu0 0.0
    %312 = vmatpush1.msra.mxu0 0.0
    %313 = vmatprep.subr.mxu0 0.0
    %314 = vmatpush1.msra.mxu0 0.0
    %315 = vmatprep.subr.mxu0 0.0
    %316 = vmatpush1.msra.mxu0 0.0
    %317 = vmatprep.subr.mxu0 0.0
    %318 = vmatpush1.msra.mxu0 0.0
    %319 = vmatprep.subr.mxu0 0.0
    %320 = vmatpush1.msra.mxu0 0.0
    %321 = vmatprep.subr.mxu0 0.0
    %322 = vmatpush1.msra.mxu0 0.0
    %323 = vmatprep.subr.mxu0 0.0
    %324 = vmatpush1.msra.mxu0 0.0
    %325 = vmatprep.subr.mxu0 0.0
    %326 = vmatpush1.msra.mxu0 0.0
    %327 = vmatprep.subr.mxu0 0.0
    %328 = vmatpush1.msra.mxu0 0.0
    %329 = vmatprep.subr.mxu0 0.0
    %330 = vmatpush1.msra.mxu0 0.0
    %331 = vmatprep.subr.mxu0 0.0
    %332 = vmatpush1.msra.mxu0 0.0
    %333 = vmatprep.subr.mxu0 0.0
    %334 = vmatpush1.msra.mxu0 0.0
    %335 = vmatprep.mubr.f32.mxu0 0.0
    %336 = vmatmul.mubr.f32.gmra.mrb[0].mxu0 %v247
    %v337 = vpop.f32.mrb[0].mxu0
    %v338 = vadd.f32 %v269, %v337
    %v339 = vpop.f32.mrb[0].mxu0
    %340 = vdwg.mxu0
    %v341 = vmax.f32 %v338, 0.0
    %v342 = vld [vmem:[#allocation4] sm:$0xff]
    %v343 = vld [vmem:[#allocation4 + $0x8] sm:$0xff]
    %v344 = vld [vmem:[#allocation4 + $0x10] sm:$0xff]
    %v345 = vld [vmem:[#allocation4 + $0x18] sm:$0xff]
    %v346 = vld [vmem:[#allocation4 + $0x20] sm:$0xff]
    %v347 = vld [vmem:[#allocation4 + $0x28] sm:$0xff]
    %v348 = vld [vmem:[#allocation4 + $0x30] sm:$0xff]
    %v349 = vld [vmem:[#allocation4 + $0x38] sm:$0xff]
    %v350 = vld [vmem:[#allocation4 + $0x40] sm:$0xff]
    %v351 = vld [vmem:[#allocation4 + $0x48] sm:$0xff]
    %v352 = vld [vmem:[#allocation4 + $0x50] sm:$0xff]
    %v353 = vld [vmem:[#allocation4 + $0x58] sm:$0xff]
    %v354 = vld [vmem:[#allocation4 + $0x60] sm:$0xff]
    %v355 = vld [vmem:[#allocation4 + $0x68] sm:$0xff]
    %v356 = vld [vmem:[#allocation4 + $0x70] sm:$0xff]
    %v357 = vld [vmem:[#allocation4 + $0x78] sm:$0xff]
    %v358 = vld [vmem:[%s8] sm:$0x1]
    %v360 = vlaneseq
    %v361 = vshrl.u32 %v360, 7
    %v362 = vsub.s32 0, %v361
    %v363 = vrot.slane %v358, %v362
    %365 = vmatprep.subr.mxu0 0.0
    %366 = vmatpush1.msra.mxu0 %v342
    %367 = vmatprep.subr.mxu0 0.0
    %368 = vmatpush1.msra.mxu0 %v343
    %369 = vmatprep.subr.mxu0 0.0
    %370 = vmatpush1.msra.mxu0 %v344
    %371 = vmatprep.subr.mxu0 0.0
    %372 = vmatpush1.msra.mxu0 %v345
    %373 = vmatprep.subr.mxu0 0.0
    %374 = vmatpush1.msra.mxu0 %v346
    %375 = vmatprep.subr.mxu0 0.0
    %376 = vmatpush1.msra.mxu0 %v347
    %377 = vmatprep.subr.mxu0 0.0
    %378 = vmatpush1.msra.mxu0 %v348
    %379 = vmatprep.subr.mxu0 0.0
    %380 = vmatpush1.msra.mxu0 %v349
    %381 = vmatprep.subr.mxu0 0.0
    %382 = vmatpush1.msra.mxu0 %v350
    %383 = vmatprep.subr.mxu0 0.0
    %384 = vmatpush1.msra.mxu0 %v351
    %385 = vmatprep.subr.mxu0 0.0
    %386 = vmatpush1.msra.mxu0 %v352
    %387 = vmatprep.subr.mxu0 0.0
    %388 = vmatpush1.msra.mxu0 %v353
    %389 = vmatprep.subr.mxu0 0.0
    %390 = vmatpush1.msra.mxu0 %v354
    %391 = vmatprep.subr.mxu0 0.0
    %392 = vmatpush1.msra.mxu0 %v355
    %393 = vmatprep.subr.mxu0 0.0
    %394 = vmatpush1.msra.mxu0 %v356
    %395 = vmatprep.subr.mxu0 0.0
    %396 = vmatpush1.msra.mxu0 %v357
    %397 = vmatprep.subr.mxu0 0.0
    %398 = vmatpush1.msra.mxu0 0.0
    %399 = vmatprep.subr.mxu0 0.0
    %400 = vmatpush1.msra.mxu0 0.0
    %401 = vmatprep.subr.mxu0 0.0
    %402 = vmatpush1.msra.mxu0 0.0
    %403 = vmatprep.subr.mxu0 0.0
    %404 = vmatpush1.msra.mxu0 0.0
    %405 = vmatprep.subr.mxu0 0.0
    %406 = vmatpush1.msra.mxu0 0.0
    %407 = vmatprep.subr.mxu0 0.0
    %408 = vmatpush1.msra.mxu0 0.0
    %409 = vmatprep.subr.mxu0 0.0
    %410 = vmatpush1.msra.mxu0 0.0
    %411 = vmatprep.subr.mxu0 0.0
    %412 = vmatpush1.msra.mxu0 0.0
    %413 = vmatprep.subr.mxu0 0.0
    %414 = vmatpush1.msra.mxu0 0.0
    %415 = vmatprep.subr.mxu0 0.0
    %416 = vmatpush1.msra.mxu0 0.0
    %417 = vmatprep.subr.mxu0 0.0
    %418 = vmatpush1.msra.mxu0 0.0
    %419 = vmatprep.subr.mxu0 0.0
    %420 = vmatpush1.msra.mxu0 0.0
    %421 = vmatprep.subr.mxu0 0.0
    %422 = vmatpush1.msra.mxu0 0.0
    %423 = vmatprep.subr.mxu0 0.0
    %424 = vmatpush1.msra.mxu0 0.0
    %425 = vmatprep.subr.mxu0 0.0
    %426 = vmatpush1.msra.mxu0 0.0
    %427 = vmatprep.subr.mxu0 0.0
    %428 = vmatpush1.msra.mxu0 0.0
    %429 = vmatprep.mubr.f32.mxu0 0.0
    %430 = vmatmul.mubr.f32.gmra.mrb[0].mxu0 %v341
    %v431 = vpop.f32.mrb[0].mxu0
    %v432 = vadd.f32 %v363, %v431
    %v433 = vpop.f32.mrb[0].mxu0
    %434 = vdwg.mxu0
    %v435 = vmax.f32 %v432, 0.0
    %v436 = vld [vmem:[#allocation6] sm:$0xff]
    %v437 = vld [vmem:[#allocation6 + $0x8] sm:$0xff]
    %v438 = vld [vmem:[#allocation6 + $0x10] sm:$0xff]
    %v439 = vld [vmem:[#allocation6 + $0x18] sm:$0xff]
    %v440 = vld [vmem:[#allocation6 + $0x20] sm:$0xff]
    %v441 = vld [vmem:[#allocation6 + $0x28] sm:$0xff]
    %v442 = vld [vmem:[#allocation6 + $0x30] sm:$0xff]
    %v443 = vld [vmem:[#allocation6 + $0x38] sm:$0xff]
    %v444 = vld [vmem:[#allocation6 + $0x40] sm:$0xff]
    %v445 = vld [vmem:[#allocation6 + $0x48] sm:$0xff]
    %v446 = vld [vmem:[#allocation6 + $0x50] sm:$0xff]
    %v447 = vld [vmem:[#allocation6 + $0x58] sm:$0xff]
    %v448 = vld [vmem:[#allocation6 + $0x60] sm:$0xff]
    %v449 = vld [vmem:[#allocation6 + $0x68] sm:$0xff]
    %v450 = vld [vmem:[#allocation6 + $0x70] sm:$0xff]
    %v451 = vld [vmem:[#allocation6 + $0x78] sm:$0xff]
    %v452 = vld [vmem:[%s10] sm:$0x1]
    %v454 = vlaneseq
    %v455 = vshrl.u32 %v454, 7
    %v456 = vsub.s32 0, %v455
    %v457 = vrot.slane %v452, %v456
    %459 = vmatprep.subr.mxu0 0.0
    %460 = vmatpush1.msra.mxu0 %v436
    %461 = vmatprep.subr.mxu0 0.0
    %462 = vmatpush1.msra.mxu0 %v437
    %463 = vmatprep.subr.mxu0 0.0
    %464 = vmatpush1.msra.mxu0 %v438
    %465 = vmatprep.subr.mxu0 0.0
    %466 = vmatpush1.msra.mxu0 %v439
    %467 = vmatprep.subr.mxu0 0.0
    %468 = vmatpush1.msra.mxu0 %v440
    %469 = vmatprep.subr.mxu0 0.0
    %470 = vmatpush1.msra.mxu0 %v441
    %471 = vmatprep.subr.mxu0 0.0
    %472 = vmatpush1.msra.mxu0 %v442
    %473 = vmatprep.subr.mxu0 0.0
    %474 = vmatpush1.msra.mxu0 %v443
    %475 = vmatprep.subr.mxu0 0.0
    %476 = vmatpush1.msra.mxu0 %v444
    %477 = vmatprep.subr.mxu0 0.0
    %478 = vmatpush1.msra.mxu0 %v445
    %479 = vmatprep.subr.mxu0 0.0
    %480 = vmatpush1.msra.mxu0 %v446
    %481 = vmatprep.subr.mxu0 0.0
    %482 = vmatpush1.msra.mxu0 %v447
    %483 = vmatprep.subr.mxu0 0.0
    %484 = vmatpush1.msra.mxu0 %v448
    %485 = vmatprep.subr.mxu0 0.0
    %486 = vmatpush1.msra.mxu0 %v449
    %487 = vmatprep.subr.mxu0 0.0
    %488 = vmatpush1.msra.mxu0 %v450
    %489 = vmatprep.subr.mxu0 0.0
    %490 = vmatpush1.msra.mxu0 %v451
    %491 = vmatprep.subr.mxu0 0.0
    %492 = vmatpush1.msra.mxu0 0.0
    %493 = vmatprep.subr.mxu0 0.0
    %494 = vmatpush1.msra.mxu0 0.0
    %495 = vmatprep.subr.mxu0 0.0
    %496 = vmatpush1.msra.mxu0 0.0
    %497 = vmatprep.subr.mxu0 0.0
    %498 = vmatpush1.msra.mxu0 0.0
    %499 = vmatprep.subr.mxu0 0.0
    %500 = vmatpush1.msra.mxu0 0.0
    %501 = vmatprep.subr.mxu0 0.0
    %502 = vmatpush1.msra.mxu0 0.0
    %503 = vmatprep.subr.mxu0 0.0
    %504 = vmatpush1.msra.mxu0 0.0
    %505 = vmatprep.subr.mxu0 0.0
    %506 = vmatpush1.msra.mxu0 0.0
    %507 = vmatprep.subr.mxu0 0.0
    %508 = vmatpush1.msra.mxu0 0.0
    %509 = vmatprep.subr.mxu0 0.0
    %510 = vmatpush1.msra.mxu0 0.0
    %511 = vmatprep.subr.mxu0 0.0
    %512 = vmatpush1.msra.mxu0 0.0
    %513 = vmatprep.subr.mxu0 0.0
    %514 = vmatpush1.msra.mxu0 0.0
    %515 = vmatprep.subr.mxu0 0.0
    %516 = vmatpush1.msra.mxu0 0.0
    %517 = vmatprep.subr.mxu0 0.0
    %518 = vmatpush1.msra.mxu0 0.0
    %519 = vmatprep.subr.mxu0 0.0
    %520 = vmatpush1.msra.mxu0 0.0
    %521 = vmatprep.subr.mxu0 0.0
    %522 = vmatpush1.msra.mxu0 0.0
    %523 = vmatprep.mubr.f32.mxu0 0.0
    %524 = vmatmul.mubr.f32.gmra.mrb[0].mxu0 %v435
    %v525 = vpop.f32.mrb[0].mxu0
    %v526 = vadd.f32 %v457, %v525
    %v527 = vpop.f32.mrb[0].mxu0
    %528 = vdwg.mxu0
    %529 = vst [vmem:[%s11] sm:$0xff] %v526
    // Predicated region
    $region58: #{softq_forward.1} parent=1 // pred_check
      _
    $region59: #{softq_forward.1} parent=1 // pred_check_branch
      %531 = sbr.rel (0) target = $region61
    $region60: #{softq_forward.1} parent=1 // pred_region
      _
    $region61: #{softq_forward.1} parent=1 // pred_fallthru
      _
    // Predicated region
    $region62: #{softq_forward.1} parent=1 // pred_check
      _
    $region63: #{softq_forward.1} parent=1 // pred_check_branch
      %533 = sbr.rel (0) target = $region65
    $region64: #{softq_forward.1} parent=1 // pred_region
      _
    $region65: #{softq_forward.1} parent=1 // pred_fallthru
      _
    %534 = vsyncpa [#allocation3], 1
    %535 = vsyncpa [#allocation5], 1

</llo_original>
